<compile_context>
chip_gen: v7x
topology: tpu7x:2x2x1
jax: 0.10.0
libtpu: 0.0.40
codegen_flags: <defaults>
</compile_context>

<pallas_src>
import math

import jax
import jax.numpy as jnp
from jax.experimental import pallas as pl
from jax.experimental.pallas import tpu as pltpu


def _basis_kernel(ct_ref, st_ref, sw_ref, sl_ref,       # VMEM (TB, 1) each
                  inx_ref, iny_ref, kf_ref, lf_ref,     # VMEM (1, L) each
                  basisc_ref, basiss_ref):              # VMEM (TB, L) each
    ct = ct_ref[...]                                    # (TB, 1)
    st = st_ref[...]
    sw = sw_ref[...]
    sl = sl_ref[...]
    inx = inx_ref[...]                                  # (1, L)
    iny = iny_ref[...]

    # Rotate + scale the pre-expanded lane-dense spatial grid — pure VPU.
    X = (ct * inx - st * iny) * sw                      # (TB, L)
    Y = (st * inx + ct * iny) * sl                      # (TB, L)

    mask = jnp.exp(-jnp.maximum(X * X + Y * Y - 1.0, 0.0) * 5.0)

    # phase[tb, s*P2 + k*inP + l] = freq[k]*X[tb,s] + freq[l]*Y[tb,s]
    phase = X * kf_ref[...] + Y * lf_ref[...]
    # NOTE: an angle-addition factorization (cos(kX+lY)=cXcY-sXsY) would cut
    # EUP transcendentals ~inP/2x but needs in-kernel lane expansion of
    # (TB, S2*inP) intermediates; kept as straight full-width cos/sin for
    # lowering robustness at small inP.
    basisc_ref[...] = jnp.cos(phase) * mask
    basiss_ref[...] = jnp.sin(phase) * mask


def _round_up(x, m):
    return (x + m - 1) // m * m


def get_basis(theta, s_w, s_l, sizeP, inP=None):
    """Pallas implementation of GetBasis.forward.

    theta, s_w, s_l: [B, C] float32
    Returns (BasisC [B,C,sizeP,sizeP,inP*inP],
             BasisS [B,C,sizeP,sizeP,inP*inP],
             Mask   [B,C,sizeP,sizeP,1,1])
    """
    if inP is None:
        inP = sizeP
    B, C = theta.shape
    BC = B * C
    S2 = sizeP * sizeP
    P2 = inP * inP
    S2P2 = S2 * P2
    L = _round_up(S2P2, 128)            # lane-dense, multiple of 128 -> unmasked vst

    # --- constants (built once, outside the kernel) -----------------------
    p = (sizeP - 1) / 2
    x = jnp.arange(-p, p + 1, dtype=jnp.float32) / p
    Xg, Yg = jnp.meshgrid(x, x)                         # [sizeP, sizeP]
    inX_flat = Xg.reshape(S2).astype(jnp.float32)       # s = i*sizeP + j
    inY_flat = Yg.reshape(S2).astype(jnp.float32)

    v = math.pi / inP * (inP - 1)
    half = inP / 2
    kk = jnp.arange(inP, dtype=jnp.float32)
    freq = (kk - inP * (kk > half).astype(jnp.float32)) * v        # [inP]

    # Lane-dense expansions over col = s*P2 + k*inP + l, zero-padded to L.
    def _pad_lane(a):
        if L != S2P2:
            a = jnp.pad(a, (0, L - S2P2))
        return a.reshape(1, L)

    inX_rep = _pad_lane(jnp.repeat(inX_flat, P2))
    inY_rep = _pad_lane(jnp.repeat(inY_flat, P2))
    kf_rep = _pad_lane(jnp.tile(jnp.repeat(freq, inP), S2))        # freq[k]
    lf_rep = _pad_lane(jnp.tile(freq, inP * S2))                   # freq[l]

    # --- per-pixel scalars: precompute cos/sin(theta) in the wrapper -------
    theta_f = theta.reshape(BC).astype(jnp.float32)
    sw_f = s_w.reshape(BC).astype(jnp.float32)
    sl_f = s_l.reshape(BC).astype(jnp.float32)
    ct_f = jnp.cos(theta_f)
    st_f = jnp.sin(theta_f)

    # --- pick the batched tile TB against a VMEM budget --------------------
    # 2 f32 outputs, double-buffered by the BlockSpec pipeline.
    vmem_budget = 24 * 1024 * 1024        # conservative for v7x (64 MiB/TC)
    row_bytes = 2 * 2 * L * 4
    tb = max(8, min(512, (vmem_budget // row_bytes) // 8 * 8))
    tb = min(tb, _round_up(BC, 8))
    BC_pad = _round_up(BC, tb)
    n_steps = BC_pad // tb

    def _col(a):
        a = a.reshape(BC, 1)
        if BC_pad != BC:
            a = jnp.pad(a, ((0, BC_pad - BC), (0, 0)))
        return a

    ct_c, st_c, sw_c, sl_c = _col(ct_f), _col(st_f), _col(sw_f), _col(sl_f)

    vmem_est = (2 * 2 * tb * L + 4 * 2 * tb + 4 * 2 * L) * 4
    vmem_limit = int(min(48 * 1024 * 1024,
                         max(32 * 1024 * 1024, 1.5 * vmem_est)))

    pixel_spec = pl.BlockSpec((tb, 1), lambda i: (i, 0))
    const_spec = pl.BlockSpec((1, L), lambda i: (0, 0))
    out_spec = pl.BlockSpec((tb, L), lambda i: (i, 0))

    basisC, basisS = pl.pallas_call(
        _basis_kernel,
        out_shape=(
            jax.ShapeDtypeStruct((BC_pad, L), jnp.float32),
            jax.ShapeDtypeStruct((BC_pad, L), jnp.float32),
        ),
        grid_spec=pltpu.PrefetchScalarGridSpec(
            num_scalar_prefetch=0,
            grid=(n_steps,),
            in_specs=[pixel_spec, pixel_spec, pixel_spec, pixel_spec,
                      const_spec, const_spec, const_spec, const_spec],
            out_specs=[out_spec, out_spec],
        ),
        compiler_params=pltpu.CompilerParams(
            dimension_semantics=("parallel",),
            vmem_limit_bytes=vmem_limit),
    )(ct_c, st_c, sw_c, sl_c, inX_rep, inY_rep, kf_rep, lf_rep)

    basisC = basisC[:BC, :S2P2].reshape(B, C, sizeP, sizeP, P2)
    basisS = basisS[:BC, :S2P2].reshape(B, C, sizeP, sizeP, P2)

    # Mask is only BC*S2 elements of cheap elementwise math; computing it here
    # avoids a lane-width-1 output DMA stream from the kernel.
    ct2 = ct_f.reshape(BC, 1)
    st2 = st_f.reshape(BC, 1)
    sw2 = sw_f.reshape(BC, 1)
    sl2 = sl_f.reshape(BC, 1)
    Xs = (ct2 * inX_flat[None, :] - st2 * inY_flat[None, :]) * sw2
    Ys = (st2 * inX_flat[None, :] + ct2 * inY_flat[None, :]) * sl2
    mask = jnp.exp(-jnp.maximum(Xs * Xs + Ys * Ys - 1.0, 0.0) * 5.0)
    mask = mask.reshape(B, C, sizeP, sizeP, 1, 1)

    # TODO(synk): the rest of Encoder.forward (MapNets, grouped conv2d, BN,
    # MerNet) is standard XLA conv/einsum machinery and is not re-implemented
    # as Pallas kernels here.
    return basisC, basisS, mask


def _reference(theta, s_w, s_l, sizeP, inP):
    """Pure-JAX transcription of the PyTorch GetBasis.forward (verification)."""
    p = (sizeP - 1) / 2
    x = jnp.arange(-p, p + 1, dtype=jnp.float32) / p
    Xg, Yg = jnp.meshgrid(x, x)
    inX = Xg[None, None]
    inY = Yg[None, None]
    th = theta[:, :, None, None]
    sw = s_w[:, :, None, None]
    sl = s_l[:, :, None, None]
    X = (jnp.cos(th) * inX - jnp.sin(th) * inY) * sw
    Y = (jnp.sin(th) * inX + jnp.cos(th) * inY) * sl
    X = X[..., None, None]
    Y = Y[..., None, None]
    Mask = jnp.exp(-jnp.maximum(X ** 2 + Y ** 2 - 1.0, 0.0) / 0.2)
    v = math.pi / inP * (inP - 1)
    half = inP / 2
    k = jnp.arange(inP, dtype=jnp.float32).reshape(1, 1, 1, 1, inP, 1)
    l = jnp.arange(inP, dtype=jnp.float32).reshape(1, 1, 1, 1, 1, inP)
    kc = (k - inP * (k > half)) * v
    lc = (l - inP * (l > half)) * v
    BasisC = jnp.cos(kc * X + lc * Y) * Mask
    BasisS = jnp.sin(kc * X + lc * Y) * Mask
    B, C = theta.shape
    return (BasisC.reshape(B, C, sizeP, sizeP, inP * inP),
            BasisS.reshape(B, C, sizeP, sizeP, inP * inP),
            Mask)


if __name__ == "__main__":
    B, C = 2, 4
    sizeP = 5
    inP = 5

    key = jax.random.PRNGKey(0)
    k1, k2, k3 = jax.random.split(key, 3)
    theta = jax.random.uniform(k1, (B, C), jnp.float32, 0.0, 2.0 * math.pi)
    s_w = jax.random.uniform(k2, (B, C), jnp.float32, 0.5, 1.5)
    s_l = jax.random.uniform(k3, (B, C), jnp.float32, 0.5, 1.5)

    basisC, basisS, mask = get_basis(theta, s_w, s_l, sizeP, inP)
    jax.block_until_ready((basisC, basisS, mask))

    refC, refS, refM = _reference(theta, s_w, s_l, sizeP, inP)
    assert basisC.shape == (B, C, sizeP, sizeP, inP * inP)
    assert basisS.shape == (B, C, sizeP, sizeP, inP * inP)
    assert mask.shape == (B, C, sizeP, sizeP, 1, 1)
    assert jnp.allclose(basisC, refC, rtol=1e-3, atol=1e-3)
    assert jnp.allclose(basisS, refS, rtol=1e-3, atol=1e-3)
    assert jnp.allclose(mask, refM, rtol=1e-3, atol=1e-3)

    print("KERNEL_OK")
</pallas_src>

<mosaic_0001>
module attributes {stable_mosaic.version = 11 : i64} {
  func.func @_basis_kernel(%arg0: i32, %arg1: memref<8x1xf32, #tpu.memory_space<vmem>>, %arg2: memref<8x1xf32, #tpu.memory_space<vmem>>, %arg3: memref<8x1xf32, #tpu.memory_space<vmem>>, %arg4: memref<8x1xf32, #tpu.memory_space<vmem>>, %arg5: memref<1x640xf32, #tpu.memory_space<vmem>>, %arg6: memref<1x640xf32, #tpu.memory_space<vmem>>, %arg7: memref<1x640xf32, #tpu.memory_space<vmem>>, %arg8: memref<1x640xf32, #tpu.memory_space<vmem>>, %arg9: memref<8x640xf32, #tpu.memory_space<vmem>>, %arg10: memref<8x640xf32, #tpu.memory_space<vmem>>) attributes {dimension_semantics = [#tpu.dimension_semantics<parallel>], iteration_bounds = array<i64: 1>, scalar_prefetch = 0 : i64, scratch_operands = 0 : i64, tpu.core_type = #tpu.core_type<tc>, window_params = [{transform_indices = @transform_0, window_bounds = array<i64: 8, 1>}, {transform_indices = @transform_1, window_bounds = array<i64: 8, 1>}, {transform_indices = @transform_2, window_bounds = array<i64: 8, 1>}, {transform_indices = @transform_3, window_bounds = array<i64: 8, 1>}, {pipeline_mode = #tpu.pipeline_mode<synchronous>, transform_indices = @transform_4, window_bounds = array<i64: 1, 640>}, {pipeline_mode = #tpu.pipeline_mode<synchronous>, transform_indices = @transform_5, window_bounds = array<i64: 1, 640>}, {pipeline_mode = #tpu.pipeline_mode<synchronous>, transform_indices = @transform_6, window_bounds = array<i64: 1, 640>}, {pipeline_mode = #tpu.pipeline_mode<synchronous>, transform_indices = @transform_7, window_bounds = array<i64: 1, 640>}, {transform_indices = @transform_8, window_bounds = array<i64: 8, 640>}, {transform_indices = @transform_9, window_bounds = array<i64: 8, 640>}]} {
    %c0 = arith.constant 0 : index
    %c0_0 = arith.constant 0 : index
    %0 = vector.load %arg1[%c0, %c0_0] : memref<8x1xf32, #tpu.memory_space<vmem>>, vector<8x1xf32>
    %c0_1 = arith.constant 0 : index
    %c0_2 = arith.constant 0 : index
    %1 = vector.load %arg2[%c0_1, %c0_2] : memref<8x1xf32, #tpu.memory_space<vmem>>, vector<8x1xf32>
    %c0_3 = arith.constant 0 : index
    %c0_4 = arith.constant 0 : index
    %2 = vector.load %arg3[%c0_3, %c0_4] : memref<8x1xf32, #tpu.memory_space<vmem>>, vector<8x1xf32>
    %c0_5 = arith.constant 0 : index
    %c0_6 = arith.constant 0 : index
    %3 = vector.load %arg4[%c0_5, %c0_6] : memref<8x1xf32, #tpu.memory_space<vmem>>, vector<8x1xf32>
    %c0_7 = arith.constant 0 : index
    %c0_8 = arith.constant 0 : index
    %4 = vector.load %arg5[%c0_7, %c0_8] : memref<1x640xf32, #tpu.memory_space<vmem>>, vector<1x640xf32>
    %c0_9 = arith.constant 0 : index
    %c0_10 = arith.constant 0 : index
    %5 = vector.load %arg6[%c0_9, %c0_10] : memref<1x640xf32, #tpu.memory_space<vmem>>, vector<1x640xf32>
    %6 = vector.broadcast %0 : vector<8x1xf32> to vector<8x640xf32>
    %7 = vector.broadcast %4 : vector<1x640xf32> to vector<8x640xf32>
    %8 = arith.mulf %6, %7 : vector<8x640xf32>
    %9 = vector.broadcast %1 : vector<8x1xf32> to vector<8x640xf32>
    %10 = vector.broadcast %5 : vector<1x640xf32> to vector<8x640xf32>
    %11 = arith.mulf %9, %10 : vector<8x640xf32>
    %12 = arith.subf %8, %11 : vector<8x640xf32>
    %13 = vector.broadcast %2 : vector<8x1xf32> to vector<8x640xf32>
    %14 = arith.mulf %12, %13 : vector<8x640xf32>
    %15 = vector.broadcast %1 : vector<8x1xf32> to vector<8x640xf32>
    %16 = vector.broadcast %4 : vector<1x640xf32> to vector<8x640xf32>
    %17 = arith.mulf %15, %16 : vector<8x640xf32>
    %18 = vector.broadcast %0 : vector<8x1xf32> to vector<8x640xf32>
    %19 = vector.broadcast %5 : vector<1x640xf32> to vector<8x640xf32>
    %20 = arith.mulf %18, %19 : vector<8x640xf32>
    %21 = arith.addf %17, %20 : vector<8x640xf32>
    %22 = vector.broadcast %3 : vector<8x1xf32> to vector<8x640xf32>
    %23 = arith.mulf %21, %22 : vector<8x640xf32>
    %24 = arith.mulf %14, %14 : vector<8x640xf32>
    %25 = arith.mulf %23, %23 : vector<8x640xf32>
    %26 = arith.addf %24, %25 : vector<8x640xf32>
    %cst = arith.constant 1.000000e+00 : f32
    %27 = vector.broadcast %cst : f32 to vector<8x640xf32>
    %28 = arith.subf %26, %27 : vector<8x640xf32>
    %cst_11 = arith.constant 0.000000e+00 : f32
    %29 = vector.broadcast %cst_11 : f32 to vector<8x640xf32>
    %30 = arith.maximumf %28, %29 : vector<8x640xf32>
    %cst_12 = arith.constant 0.000000e+00 : f32
    %31 = vector.broadcast %cst_12 : f32 to vector<8x640xf32>
    %32 = arith.subf %31, %30 : vector<8x640xf32>
    %cst_13 = arith.constant 5.000000e+00 : f32
    %33 = vector.broadcast %cst_13 : f32 to vector<8x640xf32>
    %34 = arith.mulf %32, %33 : vector<8x640xf32>
    %35 = math.exp %34 : vector<8x640xf32>
    %c0_14 = arith.constant 0 : index
    %c0_15 = arith.constant 0 : index
    %36 = vector.load %arg7[%c0_14, %c0_15] : memref<1x640xf32, #tpu.memory_space<vmem>>, vector<1x640xf32>
    %37 = vector.broadcast %36 : vector<1x640xf32> to vector<8x640xf32>
    %38 = arith.mulf %14, %37 : vector<8x640xf32>
    %c0_16 = arith.constant 0 : index
    %c0_17 = arith.constant 0 : index
    %39 = vector.load %arg8[%c0_16, %c0_17] : memref<1x640xf32, #tpu.memory_space<vmem>>, vector<1x640xf32>
    %40 = vector.broadcast %39 : vector<1x640xf32> to vector<8x640xf32>
    %41 = arith.mulf %23, %40 : vector<8x640xf32>
    %42 = arith.addf %38, %41 : vector<8x640xf32>
    %43 = math.cos %42 : vector<8x640xf32>
    %44 = arith.mulf %43, %35 : vector<8x640xf32>
    %c0_18 = arith.constant 0 : index
    %c0_19 = arith.constant 0 : index
    %45 = vector.load %arg9[%c0_18, %c0_19] : memref<8x640xf32, #tpu.memory_space<vmem>>, vector<8x640xf32>
    tpu.vector_store %arg9[%c0_18, %c0_19], %44 {strides = array<i32>} : memref<8x640xf32, #tpu.memory_space<vmem>>, vector<8x640xf32>,
    %46 = math.sin %42 : vector<8x640xf32>
    %47 = arith.mulf %46, %35 : vector<8x640xf32>
    %c0_20 = arith.constant 0 : index
    %c0_21 = arith.constant 0 : index
    %48 = vector.load %arg10[%c0_20, %c0_21] : memref<8x640xf32, #tpu.memory_space<vmem>>, vector<8x640xf32>
    tpu.vector_store %arg10[%c0_20, %c0_21], %47 {strides = array<i32>} : memref<8x640xf32, #tpu.memory_space<vmem>>, vector<8x640xf32>,
    return
  }
  func.func @transform_0(%arg0: i32) -> (i32, i32) {
    %c0_i32 = arith.constant 0 : i32
    %c0_i32_0 = arith.constant 0 : i32
    return %arg0, %c0_i32 : i32, i32
  }
  func.func @transform_1(%arg0: i32) -> (i32, i32) {
    %c0_i32 = arith.constant 0 : i32
    %c0_i32_0 = arith.constant 0 : i32
    return %arg0, %c0_i32 : i32, i32
  }
  func.func @transform_2(%arg0: i32) -> (i32, i32) {
    %c0_i32 = arith.constant 0 : i32
    %c0_i32_0 = arith.constant 0 : i32
    return %arg0, %c0_i32 : i32, i32
  }
  func.func @transform_3(%arg0: i32) -> (i32, i32) {
    %c0_i32 = arith.constant 0 : i32
    %c0_i32_0 = arith.constant 0 : i32
    return %arg0, %c0_i32 : i32, i32
  }
  func.func @transform_4(%arg0: i32) -> (i32, i32) {
    %c0_i32 = arith.constant 0 : i32
    %c0_i32_0 = arith.constant 0 : i32
    %c0_i32_1 = arith.constant 0 : i32
    return %c0_i32, %c0_i32_0 : i32, i32
  }
  func.func @transform_5(%arg0: i32) -> (i32, i32) {
    %c0_i32 = arith.constant 0 : i32
    %c0_i32_0 = arith.constant 0 : i32
    %c0_i32_1 = arith.constant 0 : i32
    return %c0_i32, %c0_i32_0 : i32, i32
  }
  func.func @transform_6(%arg0: i32) -> (i32, i32) {
    %c0_i32 = arith.constant 0 : i32
    %c0_i32_0 = arith.constant 0 : i32
    %c0_i32_1 = arith.constant 0 : i32
    return %c0_i32, %c0_i32_0 : i32, i32
  }
  func.func @transform_7(%arg0: i32) -> (i32, i32) {
    %c0_i32 = arith.constant 0 : i32
    %c0_i32_0 = arith.constant 0 : i32
    %c0_i32_1 = arith.constant 0 : i32
    return %c0_i32, %c0_i32_0 : i32, i32
  }
  func.func @transform_8(%arg0: i32) -> (i32, i32) {
    %c0_i32 = arith.constant 0 : i32
    %c0_i32_0 = arith.constant 0 : i32
    return %arg0, %c0_i32 : i32, i32
  }
  func.func @transform_9(%arg0: i32) -> (i32, i32) {
    %c0_i32 = arith.constant 0 : i32
    %c0_i32_0 = arith.constant 0 : i32
    return %arg0, %c0_i32 : i32, i32
  }
}

</mosaic_0001>

<llo_original>
// kernel: tpu_custom_call.1
$region0: #{tpu_custom_call.1}
  #allocation0 [shape = 'u32[]', space=smem, size = 0x4, offset = 0x4, fixed_abs, tag = 'smem constant byte address 0x4 - core index']
  #allocation1 [shape = 'u32[144,128]{1,0:T(1,128)}', space=vmem, size = 0x12000, scoped, tag = 'internal scratch']
  %s0 = inlined_call_operand.vmem [shape: f32[8,1], index: 0, kind: input, shape index: {}]
  %s1 = inlined_call_operand.vmem [shape: f32[8,1], index: 1, kind: input, shape index: {}]
  %s2 = inlined_call_operand.vmem [shape: f32[8,1], index: 2, kind: input, shape index: {}]
  %s3 = inlined_call_operand.vmem [shape: f32[8,1], index: 3, kind: input, shape index: {}]
  %s4 = inlined_call_operand.vmem [shape: f32[1,640], index: 4, kind: input, shape index: {}]
  %s5 = inlined_call_operand.vmem [shape: f32[1,640], index: 5, kind: input, shape index: {}]
  %s6 = inlined_call_operand.vmem [shape: f32[1,640], index: 6, kind: input, shape index: {}]
  %s7 = inlined_call_operand.vmem [shape: f32[1,640], index: 7, kind: input, shape index: {}]
  %s8 = inlined_call_operand.hbm [shape: f32[8,640], index: 8, kind: output, shape index: {0}]
  %s9 = inlined_call_operand.hbm [shape: f32[8,640], index: 9, kind: output, shape index: {1}]
  %10 = xla_tuple %s8, %s9
  %s11 = sld [smem:[#allocation0]]
  $region50: #{tpu_custom_call.1} parent=0
    _
  %s13 = ssub.s32 1, %s11
  %s14 = scalar_select 0, %s13, %s11
  $region1: #{tpu_custom_call.1} parent=0
    #allocation2 [shape = 'u8[20480]{0}', space=vmem, size = 0x5000, scoped, tag = 'output window, operand 0, single buffered']
    #allocation3 [shape = 's32[1]{0}', space=sflag, size = 0x4, scoped, tag = 'scoped memory for tpu_custom_call.1']
    #allocation4 [shape = 'u8[20480]{0}', space=vmem, size = 0x5000, scoped, tag = 'output window, operand 1, single buffered']
    #allocation5 [shape = 's32[1]{0}', space=sflag, size = 0x4, scoped, tag = 'scoped memory for tpu_custom_call.1']
    %15 = vsyncpa [#allocation3], 0
    %16 = vsyncpa [#allocation5], 0
    // Predicated region
    $region2: #{tpu_custom_call.1} parent=1 // pred_check
      _
    $region3: #{tpu_custom_call.1} parent=1 // pred_check_branch
      %18 = sbr.rel (0) target = $region5
    $region4: #{tpu_custom_call.1} parent=1 // pred_region
      _
    $region5: #{tpu_custom_call.1} parent=1 // pred_fallthru
      _
    // Predicated region
    $region6: #{tpu_custom_call.1} parent=1 // pred_check
      _
    $region7: #{tpu_custom_call.1} parent=1 // pred_check_branch
      %20 = sbr.rel (0) target = $region9
    $region8: #{tpu_custom_call.1} parent=1 // pred_region
      _
    $region9: #{tpu_custom_call.1} parent=1 // pred_fallthru
      _
    // Predicated region
    $region10: #{tpu_custom_call.1} parent=1 // pred_check
      _
    $region11: #{tpu_custom_call.1} parent=1 // pred_check_branch
      %22 = sbr.rel (0) target = $region13
    $region12: #{tpu_custom_call.1} parent=1 // pred_region
      _
    $region13: #{tpu_custom_call.1} parent=1 // pred_fallthru
      _
    // Predicated region
    $region14: #{tpu_custom_call.1} parent=1 // pred_check
      _
    $region15: #{tpu_custom_call.1} parent=1 // pred_check_branch
      %24 = sbr.rel (0) target = $region17
    $region16: #{tpu_custom_call.1} parent=1 // pred_region
      _
    $region17: #{tpu_custom_call.1} parent=1 // pred_fallthru
      _
    // Predicated region
    $region18: #{tpu_custom_call.1} parent=1 // pred_check
      _
    $region19: #{tpu_custom_call.1} parent=1 // pred_check_branch
      %26 = sbr.rel (0) target = $region21
    $region20: #{tpu_custom_call.1} parent=1 // pred_region
      _
    $region21: #{tpu_custom_call.1} parent=1 // pred_fallthru
      _
    // Predicated region
    $region22: #{tpu_custom_call.1} parent=1 // pred_check
      _
    $region23: #{tpu_custom_call.1} parent=1 // pred_check_branch
      %28 = sbr.rel (0) target = $region25
    $region24: #{tpu_custom_call.1} parent=1 // pred_region
      _
    $region25: #{tpu_custom_call.1} parent=1 // pred_fallthru
      _
    // Predicated region
    $region26: #{tpu_custom_call.1} parent=1 // pred_check
      _
    $region27: #{tpu_custom_call.1} parent=1 // pred_check_branch
      %30 = sbr.rel (0) target = $region29
    $region28: #{tpu_custom_call.1} parent=1 // pred_region
      _
    $region29: #{tpu_custom_call.1} parent=1 // pred_fallthru
      _
    // Predicated region
    $region30: #{tpu_custom_call.1} parent=1 // pred_check
      _
    $region31: #{tpu_custom_call.1} parent=1 // pred_check_branch
      %32 = sbr.rel (0) target = $region33
    $region32: #{tpu_custom_call.1} parent=1 // pred_region
      _
    $region33: #{tpu_custom_call.1} parent=1 // pred_fallthru
      _
    %v33 = vld [vmem:[%s0] sm:$0xff]
    %v34 = vld [vmem:[%s1] sm:$0xff]
    %v35 = vld [vmem:[%s2] sm:$0xff]
    %v36 = vld [vmem:[%s3] sm:$0xff]
    %v37 = vld [vmem:[%s4] sm:$0x1f]
    %v38 = vld [vmem:[%s5] sm:$0x1f]
    %40 = vset.pattern.permute.xlu0 0
    %41 = vperm.xlu0 %40, %v33
    %v42 = vpop.permute.xlu0 %41
    %v45 = vlaneseq
    %v46 = vshrl.u32 %v45, 7
    %v47 = vsub.s32 0, %v46
    %v48 = vrot.slane %v37, %v47
    %v49 = vlaneseq
    %v50 = vshrl.u32 %v49, 7
    %v51 = vsub.s32 1, %v50
    %v52 = vrot.slane %v37, %v51
    %v53 = vlaneseq
    %v54 = vshrl.u32 %v53, 7
    %v55 = vsub.s32 2, %v54
    %v56 = vrot.slane %v37, %v55
    %v57 = vlaneseq
    %v58 = vshrl.u32 %v57, 7
    %v59 = vsub.s32 3, %v58
    %v60 = vrot.slane %v37, %v59
    %v61 = vlaneseq
    %v62 = vshrl.u32 %v61, 7
    %v63 = vsub.s32 4, %v62
    %v64 = vrot.slane %v37, %v63
    %v70 = vmul.f32 %v42, %v48
    %v71 = vmul.f32 %v42, %v52
    %v72 = vmul.f32 %v42, %v56
    %v73 = vmul.f32 %v42, %v60
    %v74 = vmul.f32 %v42, %v64
    %76 = vset.pattern.permute.xlu0 0
    %77 = vperm.xlu0 %76, %v34
    %v78 = vpop.permute.xlu0 %77
    %v81 = vlaneseq
    %v82 = vshrl.u32 %v81, 7
    %v83 = vsub.s32 0, %v82
    %v84 = vrot.slane %v38, %v83
    %v85 = vlaneseq
    %v86 = vshrl.u32 %v85, 7
    %v87 = vsub.s32 1, %v86
    %v88 = vrot.slane %v38, %v87
    %v89 = vlaneseq
    %v90 = vshrl.u32 %v89, 7
    %v91 = vsub.s32 2, %v90
    %v92 = vrot.slane %v38, %v91
    %v93 = vlaneseq
    %v94 = vshrl.u32 %v93, 7
    %v95 = vsub.s32 3, %v94
    %v96 = vrot.slane %v38, %v95
    %v97 = vlaneseq
    %v98 = vshrl.u32 %v97, 7
    %v99 = vsub.s32 4, %v98
    %v100 = vrot.slane %v38, %v99
    %v106 = vmul.f32 %v78, %v84
    %v107 = vmul.f32 %v78, %v88
    %v108 = vmul.f32 %v78, %v92
    %v109 = vmul.f32 %v78, %v96
    %v110 = vmul.f32 %v78, %v100
    %v111 = vsub.f32 %v70, %v106
    %v112 = vsub.f32 %v71, %v107
    %v113 = vsub.f32 %v72, %v108
    %v114 = vsub.f32 %v73, %v109
    %v115 = vsub.f32 %v74, %v110
    %117 = vset.pattern.permute.xlu0 0
    %118 = vperm.xlu0 %117, %v35
    %v119 = vpop.permute.xlu0 %118
    %v121 = vmul.f32 %v111, %v119
    %v122 = vmul.f32 %v112, %v119
    %v123 = vmul.f32 %v113, %v119
    %v124 = vmul.f32 %v114, %v119
    %v125 = vmul.f32 %v115, %v119
    %v126 = vmul.f32 %v78, %v48
    %v127 = vmul.f32 %v78, %v52
    %v128 = vmul.f32 %v78, %v56
    %v129 = vmul.f32 %v78, %v60
    %v130 = vmul.f32 %v78, %v64
    %v131 = vmul.f32 %v42, %v84
    %v132 = vmul.f32 %v42, %v88
    %v133 = vmul.f32 %v42, %v92
    %v134 = vmul.f32 %v42, %v96
    %v135 = vmul.f32 %v42, %v100
    %v136 = vadd.f32 %v126, %v131
    %v137 = vadd.f32 %v127, %v132
    %v138 = vadd.f32 %v128, %v133
    %v139 = vadd.f32 %v129, %v134
    %v140 = vadd.f32 %v130, %v135
    %142 = vset.pattern.permute.xlu0 0
    %143 = vperm.xlu0 %142, %v36
    %v144 = vpop.permute.xlu0 %143
    %v146 = vmul.f32 %v136, %v144
    %v147 = vmul.f32 %v137, %v144
    %v148 = vmul.f32 %v138, %v144
    %v149 = vmul.f32 %v139, %v144
    %v150 = vmul.f32 %v140, %v144
    %v151 = vmul.f32 %v121, %v121
    %v152 = vmul.f32 %v122, %v122
    %v153 = vmul.f32 %v123, %v123
    %v154 = vmul.f32 %v124, %v124
    %v155 = vmul.f32 %v125, %v125
    %v156 = vmul.f32 %v146, %v146
    %v157 = vmul.f32 %v147, %v147
    %v158 = vmul.f32 %v148, %v148
    %v159 = vmul.f32 %v149, %v149
    %v160 = vmul.f32 %v150, %v150
    %v161 = vadd.f32 %v151, %v156
    %v162 = vadd.f32 %v152, %v157
    %v163 = vadd.f32 %v153, %v158
    %v164 = vadd.f32 %v154, %v159
    %v165 = vadd.f32 %v155, %v160
    %v166 = vsub.f32 %v161, 1.0
    %v167 = vsub.f32 %v162, 1.0
    %v168 = vsub.f32 %v163, 1.0
    %v169 = vsub.f32 %v164, 1.0
    %v170 = vsub.f32 %v165, 1.0
    %v171 = vmax.f32 %v166, 0.0
    %v172 = vmax.f32 %v167, 0.0
    %v173 = vmax.f32 %v168, 0.0
    %v174 = vmax.f32 %v169, 0.0
    %v175 = vmax.f32 %v170, 0.0
    %v176 = vsub.f32 0.0, %v171
    %v177 = vsub.f32 0.0, %v172
    %v178 = vsub.f32 0.0, %v173
    %v179 = vsub.f32 0.0, %v174
    %v180 = vsub.f32 0.0, %v175
    %v181 = vmul.f32 %v176, 5.0
    %v182 = vmul.f32 %v177, 5.0
    %v183 = vmul.f32 %v178, 5.0
    %v184 = vmul.f32 %v179, 5.0
    %v185 = vmul.f32 %v180, 5.0
    %v186 = vmul.f32 %v181, 1.442695
    %v187 = vpow.pop %v186
    %v188 = vmul.f32 %v182, 1.442695
    %v189 = vpow.pop %v188
    %v190 = vmul.f32 %v183, 1.442695
    %v191 = vpow.pop %v190
    %v192 = vmul.f32 %v184, 1.442695
    %v193 = vpow.pop %v192
    %v194 = vmul.f32 %v185, 1.442695
    %v195 = vpow.pop %v194
    %v196 = vld [vmem:[%s6] sm:$0x1f]
    %v198 = vlaneseq
    %v199 = vshrl.u32 %v198, 7
    %v200 = vsub.s32 0, %v199
    %v201 = vrot.slane %v196, %v200
    %v202 = vlaneseq
    %v203 = vshrl.u32 %v202, 7
    %v204 = vsub.s32 1, %v203
    %v205 = vrot.slane %v196, %v204
    %v206 = vlaneseq
    %v207 = vshrl.u32 %v206, 7
    %v208 = vsub.s32 2, %v207
    %v209 = vrot.slane %v196, %v208
    %v210 = vlaneseq
    %v211 = vshrl.u32 %v210, 7
    %v212 = vsub.s32 3, %v211
    %v213 = vrot.slane %v196, %v212
    %v214 = vlaneseq
    %v215 = vshrl.u32 %v214, 7
    %v216 = vsub.s32 4, %v215
    %v217 = vrot.slane %v196, %v216
    %v223 = vmul.f32 %v121, %v201
    %v224 = vmul.f32 %v122, %v205
    %v225 = vmul.f32 %v123, %v209
    %v226 = vmul.f32 %v124, %v213
    %v227 = vmul.f32 %v125, %v217
    %v228 = vld [vmem:[%s7] sm:$0x1f]
    %v230 = vlaneseq
    %v231 = vshrl.u32 %v230, 7
    %v232 = vsub.s32 0, %v231
    %v233 = vrot.slane %v228, %v232
    %v234 = vlaneseq
    %v235 = vshrl.u32 %v234, 7
    %v236 = vsub.s32 1, %v235
    %v237 = vrot.slane %v228, %v236
    %v238 = vlaneseq
    %v239 = vshrl.u32 %v238, 7
    %v240 = vsub.s32 2, %v239
    %v241 = vrot.slane %v228, %v240
    %v242 = vlaneseq
    %v243 = vshrl.u32 %v242, 7
    %v244 = vsub.s32 3, %v243
    %v245 = vrot.slane %v228, %v244
    %v246 = vlaneseq
    %v247 = vshrl.u32 %v246, 7
    %v248 = vsub.s32 4, %v247
    %v249 = vrot.slane %v228, %v248
    %v255 = vmul.f32 %v146, %v233
    %v256 = vmul.f32 %v147, %v237
    %v257 = vmul.f32 %v148, %v241
    %v258 = vmul.f32 %v149, %v245
    %v259 = vmul.f32 %v150, %v249
    %v260 = vadd.f32 %v223, %v255
    %v261 = vadd.f32 %v224, %v256
    %v262 = vadd.f32 %v225, %v257
    %v263 = vadd.f32 %v226, %v258
    %v264 = vadd.f32 %v227, %v259
    %v265 = vand.u32 2147483647, %v260
    %vm266 = vcmp.le.f32.partialorder %v265, 0.7853982
    %vm267 = vcmp.lt.s32.totalorder %v260, 0
    %v268 = vand.u32 %v260, 2139095040
    %v269 = vshrl.u32 %v268, 23
    %v270 = vsub.s32 %v269, 127
    %v271 = vand.u32 2147483647, %v260
    %v272 = vand.u32 %v271, 8388607
    %v273 = vor.u32 %v272, 8388608
    %v274 = vsub.s32 0, %v273
    %v275 = vadd.s32 %v270, 1
    %vm276 = vcmp.gt.s32.totalorder %v275, 0
    %v277 = vsel %vm276, %v275, 0
    %v278 = vshrl.u32 %v277, 5
    %v279 = vand.u32 %v277, 31
    %v280 = vsub.s32 32, %v279
    %v281 = vshrl.u32 683565275, %v280
    %v282 = vshll.u32 683565275, %v279
    %v283 = vshrl.u32 2475754826, %v280
    %v284 = vor.u32 %v282, %v283
    %v285 = vshll.u32 2475754826, %v279
    %v286 = vshrl.u32 2131351028, %v280
    %v287 = vor.u32 %v285, %v286
    %v288 = vshll.u32 2131351028, %v279
    %v289 = vshrl.u32 2102212464, %v280
    %v290 = vor.u32 %v288, %v289
    %v291 = vshll.u32 2102212464, %v279
    %v292 = vshrl.u32 920167782, %v280
    %v293 = vor.u32 %v291, %v292
    %v294 = vshll.u32 920167782, %v279
    %v295 = vshrl.u32 1326507024, %v280
    %v296 = vor.u32 %v294, %v295
    %vm297 = vcmp.lt.s32.totalorder %v278, 1
    %vm298 = vcmp.lt.s32.totalorder %v278, 2
    %vm299 = vcmp.lt.s32.totalorder %v278, 3
    %vm300 = vcmp.lt.s32.totalorder %v278, 4
    %v301 = vsel %vm297, %v281, %v284
    %v302 = vsel %vm300, %v290, 2102212464
    %v303 = vsel %vm299, %v287, %v302
    %v304 = vsel %vm298, %v301, %v303
    %v305 = vsel %vm297, %v284, %v287
    %v306 = vsel %vm300, %v293, 920167782
    %v307 = vsel %vm299, %v290, %v306
    %v308 = vsel %vm298, %v305, %v307
    %v309 = vsel %vm297, %v287, %v290
    %v310 = vsel %vm300, %v296, 1326507024
    %v311 = vsel %vm299, %v293, %v310
    %v312 = vsel %vm298, %v309, %v311
    %v313 = vshll.u32 %v273, 8
    %v314 = vmul.u32.u64.compose %v313, %v312
    %v315 = vextract.low.u32 %v314
    %v316 = vextract.high.u32 %v314
    %v317 = vmul.u32.u64.compose %v313, %v308
    %v318 = vextract.low.u32 %v317
    %v319 = vextract.high.u32 %v317
    %v320 = vmul.u32 %v313, %v304
    %v321 = vadd.s32 %v316, %v318
    %vm322 = vc.u32 %v316, %v318
    %v323 = vadd.s32 %v319, 1
    %v324 = vsel %vm322, %v323, %v319
    %v325 = vadd.s32 %v320, %v324
    %v326 = vadd.s32 %v325, 536870912
    %v327 = vshrl.u32 %v326, 30
    %v328 = vshll.u32 %v327, 30
    %v329 = vsub.s32 %v325, %v328
    %vm330 = vcmp.lt.s32.totalorder %v329, 0
    %v331 = vsub.s32 0, %v329
    %v332 = vsel %vm330, %v331, %v329
    %v333 = vclz %v332
    %v334 = vsub.s32 %v333, 2
    %vm335 = vcmp.gt.s32.totalorder 0, %v334
    %v336 = vsel %vm335, 0, %v334
    %v337 = vsub.s32 32, %v336
    %v338 = vshll.u32 %v329, %v336
    %v339 = vshrl.u32 %v321, %v337
    %v340 = vor.u32 %v338, %v339
    %v341 = vsub.s32 4294967266, %v336
    %v342 = vadd.s32 %v341, 127
    %v343 = vshll.u32 %v342, 23
    %v344 = vor.u32 4788187, %v343
    %v345 = vand.u32 2147483647, %v344
    %v347 = vcvt.s32.f32 %v340
    %v348 = vmul.f32 %v347, %v345
    %v349 = vxor.u32 %v348, 2147483648
    %v350 = vsel %vm267, %v349, %v348
    %v351 = vsub.s32 4, %v327
    %v352 = vsel %vm267, %v351, %v327
    %v353 = vsel %vm266, %v260, %v350
    %v354 = vsel %vm266, 0, %v352
    %v355 = vcosq.f32.pop %v353
    %v356 = vsinq.f32.pop %v353
    %vm357 = vweird.f32 %v260
    %v358 = vand.u32 %v354, 3
    %vm359 = vcmp.lt.s32.totalorder %v358, 2
    %vm360 = vcmp.eq.s32.totalorder %v358, 0
    %v361 = vxor.u32 %v356, 2147483648
    %v362 = vsel %vm360, %v355, %v361
    %vm363 = vcmp.eq.s32.totalorder %v358, 2
    %v364 = vxor.u32 %v355, 2147483648
    %v365 = vsel %vm363, %v364, %v356
    %v366 = vsel %vm359, %v362, %v365
    %v367 = vsel %vm357, nan, %v366
    %v368 = vand.u32 2147483647, %v261
    %vm369 = vcmp.le.f32.partialorder %v368, 0.7853982
    %vm370 = vcmp.lt.s32.totalorder %v261, 0
    %v371 = vand.u32 %v261, 2139095040
    %v372 = vshrl.u32 %v371, 23
    %v373 = vsub.s32 %v372, 127
    %v374 = vand.u32 2147483647, %v261
    %v375 = vand.u32 %v374, 8388607
    %v376 = vor.u32 %v375, 8388608
    %v377 = vsub.s32 0, %v376
    %v378 = vadd.s32 %v373, 1
    %vm379 = vcmp.gt.s32.totalorder %v378, 0
    %v380 = vsel %vm379, %v378, 0
    %v381 = vshrl.u32 %v380, 5
    %v382 = vand.u32 %v380, 31
    %v383 = vsub.s32 32, %v382
    %v384 = vshrl.u32 683565275, %v383
    %v385 = vshll.u32 683565275, %v382
    %v386 = vshrl.u32 2475754826, %v383
    %v387 = vor.u32 %v385, %v386
    %v388 = vshll.u32 2475754826, %v382
    %v389 = vshrl.u32 2131351028, %v383
    %v390 = vor.u32 %v388, %v389
    %v391 = vshll.u32 2131351028, %v382
    %v392 = vshrl.u32 2102212464, %v383
    %v393 = vor.u32 %v391, %v392
    %v394 = vshll.u32 2102212464, %v382
    %v395 = vshrl.u32 920167782, %v383
    %v396 = vor.u32 %v394, %v395
    %v397 = vshll.u32 920167782, %v382
    %v398 = vshrl.u32 1326507024, %v383
    %v399 = vor.u32 %v397, %v398
    %vm400 = vcmp.lt.s32.totalorder %v381, 1
    %vm401 = vcmp.lt.s32.totalorder %v381, 2
    %vm402 = vcmp.lt.s32.totalorder %v381, 3
    %vm403 = vcmp.lt.s32.totalorder %v381, 4
    %v404 = vsel %vm400, %v384, %v387
    %v405 = vsel %vm403, %v393, 2102212464
    %v406 = vsel %vm402, %v390, %v405
    %v407 = vsel %vm401, %v404, %v406
    %v408 = vsel %vm400, %v387, %v390
    %v409 = vsel %vm403, %v396, 920167782
    %v410 = vsel %vm402, %v393, %v409
    %v411 = vsel %vm401, %v408, %v410
    %v412 = vsel %vm400, %v390, %v393
    %v413 = vsel %vm403, %v399, 1326507024
    %v414 = vsel %vm402, %v396, %v413
    %v415 = vsel %vm401, %v412, %v414
    %v416 = vshll.u32 %v376, 8
    %v417 = vmul.u32.u64.compose %v416, %v415
    %v418 = vextract.low.u32 %v417
    %v419 = vextract.high.u32 %v417
    %v420 = vmul.u32.u64.compose %v416, %v411
    %v421 = vextract.low.u32 %v420
    %v422 = vextract.high.u32 %v420
    %v423 = vmul.u32 %v416, %v407
    %v424 = vadd.s32 %v419, %v421
    %vm425 = vc.u32 %v419, %v421
    %v426 = vadd.s32 %v422, 1
    %v427 = vsel %vm425, %v426, %v422
    %v428 = vadd.s32 %v423, %v427
    %v429 = vadd.s32 %v428, 536870912
    %v430 = vshrl.u32 %v429, 30
    %v431 = vshll.u32 %v430, 30
    %v432 = vsub.s32 %v428, %v431
    %vm433 = vcmp.lt.s32.totalorder %v432, 0
    %v434 = vsub.s32 0, %v432
    %v435 = vsel %vm433, %v434, %v432
    %v436 = vclz %v435
    %v437 = vsub.s32 %v436, 2
    %vm438 = vcmp.gt.s32.totalorder 0, %v437
    %v439 = vsel %vm438, 0, %v437
    %v440 = vsub.s32 32, %v439
    %v441 = vshll.u32 %v432, %v439
    %v442 = vshrl.u32 %v424, %v440
    %v443 = vor.u32 %v441, %v442
    %v444 = vsub.s32 4294967266, %v439
    %v445 = vadd.s32 %v444, 127
    %v446 = vshll.u32 %v445, 23
    %v447 = vor.u32 4788187, %v446
    %v448 = vand.u32 2147483647, %v447
    %v450 = vcvt.s32.f32 %v443
    %v451 = vmul.f32 %v450, %v448
    %v452 = vxor.u32 %v451, 2147483648
    %v453 = vsel %vm370, %v452, %v451
    %v454 = vsub.s32 4, %v430
    %v455 = vsel %vm370, %v454, %v430
    %v456 = vsel %vm369, %v261, %v453
    %v457 = vsel %vm369, 0, %v455
    %v458 = vcosq.f32.pop %v456
    %v459 = vsinq.f32.pop %v456
    %vm460 = vweird.f32 %v261
    %v461 = vand.u32 %v457, 3
    %vm462 = vcmp.lt.s32.totalorder %v461, 2
    %vm463 = vcmp.eq.s32.totalorder %v461, 0
    %v464 = vxor.u32 %v459, 2147483648
    %v465 = vsel %vm463, %v458, %v464
    %vm466 = vcmp.eq.s32.totalorder %v461, 2
    %v467 = vxor.u32 %v458, 2147483648
    %v468 = vsel %vm466, %v467, %v459
    %v469 = vsel %vm462, %v465, %v468
    %v470 = vsel %vm460, nan, %v469
    %v471 = vand.u32 2147483647, %v262
    %vm472 = vcmp.le.f32.partialorder %v471, 0.7853982
    %vm473 = vcmp.lt.s32.totalorder %v262, 0
    %v474 = vand.u32 %v262, 2139095040
    %v475 = vshrl.u32 %v474, 23
    %v476 = vsub.s32 %v475, 127
    %v477 = vand.u32 2147483647, %v262
    %v478 = vand.u32 %v477, 8388607
    %v479 = vor.u32 %v478, 8388608
    %v480 = vsub.s32 0, %v479
    %v481 = vadd.s32 %v476, 1
    %vm482 = vcmp.gt.s32.totalorder %v481, 0
    %v483 = vsel %vm482, %v481, 0
    %v484 = vshrl.u32 %v483, 5
    %v485 = vand.u32 %v483, 31
    %v486 = vsub.s32 32, %v485
    %v487 = vshrl.u32 683565275, %v486
    %v488 = vshll.u32 683565275, %v485
    %v489 = vshrl.u32 2475754826, %v486
    %v490 = vor.u32 %v488, %v489
    %v491 = vshll.u32 2475754826, %v485
    %v492 = vshrl.u32 2131351028, %v486
    %v493 = vor.u32 %v491, %v492
    %v494 = vshll.u32 2131351028, %v485
    %v495 = vshrl.u32 2102212464, %v486
    %v496 = vor.u32 %v494, %v495
    %v497 = vshll.u32 2102212464, %v485
    %v498 = vshrl.u32 920167782, %v486
    %v499 = vor.u32 %v497, %v498
    %v500 = vshll.u32 920167782, %v485
    %v501 = vshrl.u32 1326507024, %v486
    %v502 = vor.u32 %v500, %v501
    %vm503 = vcmp.lt.s32.totalorder %v484, 1
    %vm504 = vcmp.lt.s32.totalorder %v484, 2
    %vm505 = vcmp.lt.s32.totalorder %v484, 3
    %vm506 = vcmp.lt.s32.totalorder %v484, 4
    %v507 = vsel %vm503, %v487, %v490
    %v508 = vsel %vm506, %v496, 2102212464
    %v509 = vsel %vm505, %v493, %v508
    %v510 = vsel %vm504, %v507, %v509
    %v511 = vsel %vm503, %v490, %v493
    %v512 = vsel %vm506, %v499, 920167782
    %v513 = vsel %vm505, %v496, %v512
    %v514 = vsel %vm504, %v511, %v513
    %v515 = vsel %vm503, %v493, %v496
    %v516 = vsel %vm506, %v502, 1326507024
    %v517 = vsel %vm505, %v499, %v516
    %v518 = vsel %vm504, %v515, %v517
    %v519 = vshll.u32 %v479, 8
    %v520 = vmul.u32.u64.compose %v519, %v518
    %v521 = vextract.low.u32 %v520
    %v522 = vextract.high.u32 %v520
    %v523 = vmul.u32.u64.compose %v519, %v514
    %v524 = vextract.low.u32 %v523
    %v525 = vextract.high.u32 %v523
    %v526 = vmul.u32 %v519, %v510
    %v527 = vadd.s32 %v522, %v524
    %vm528 = vc.u32 %v522, %v524
    %v529 = vadd.s32 %v525, 1
    %v530 = vsel %vm528, %v529, %v525
    %v531 = vadd.s32 %v526, %v530
    %v532 = vadd.s32 %v531, 536870912
    %v533 = vshrl.u32 %v532, 30
    %v534 = vshll.u32 %v533, 30
    %v535 = vsub.s32 %v531, %v534
    %vm536 = vcmp.lt.s32.totalorder %v535, 0
    %v537 = vsub.s32 0, %v535
    %v538 = vsel %vm536, %v537, %v535
    %v539 = vclz %v538
    %v540 = vsub.s32 %v539, 2
    %vm541 = vcmp.gt.s32.totalorder 0, %v540
    %v542 = vsel %vm541, 0, %v540
    %v543 = vsub.s32 32, %v542
    %v544 = vshll.u32 %v535, %v542
    %v545 = vshrl.u32 %v527, %v543
    %v546 = vor.u32 %v544, %v545
    %v547 = vsub.s32 4294967266, %v542
    %v548 = vadd.s32 %v547, 127
    %v549 = vshll.u32 %v548, 23
    %v550 = vor.u32 4788187, %v549
    %v551 = vand.u32 2147483647, %v550
    %v553 = vcvt.s32.f32 %v546
    %v554 = vmul.f32 %v553, %v551
    %v555 = vxor.u32 %v554, 2147483648
    %v556 = vsel %vm473, %v555, %v554
    %v557 = vsub.s32 4, %v533
    %v558 = vsel %vm473, %v557, %v533
    %v559 = vsel %vm472, %v262, %v556
    %v560 = vsel %vm472, 0, %v558
    %v561 = vcosq.f32.pop %v559
    %v562 = vsinq.f32.pop %v559
    %vm563 = vweird.f32 %v262
    %v564 = vand.u32 %v560, 3
    %vm565 = vcmp.lt.s32.totalorder %v564, 2
    %vm566 = vcmp.eq.s32.totalorder %v564, 0
    %v567 = vxor.u32 %v562, 2147483648
    %v568 = vsel %vm566, %v561, %v567
    %vm569 = vcmp.eq.s32.totalorder %v564, 2
    %v570 = vxor.u32 %v561, 2147483648
    %v571 = vsel %vm569, %v570, %v562
    %v572 = vsel %vm565, %v568, %v571
    %v573 = vsel %vm563, nan, %v572
    %v574 = vand.u32 2147483647, %v263
    %vm575 = vcmp.le.f32.partialorder %v574, 0.7853982
    %vm576 = vcmp.lt.s32.totalorder %v263, 0
    %v577 = vand.u32 %v263, 2139095040
    %v578 = vshrl.u32 %v577, 23
    %v579 = vsub.s32 %v578, 127
    %v580 = vand.u32 2147483647, %v263
    %v581 = vand.u32 %v580, 8388607
    %v582 = vor.u32 %v581, 8388608
    %v583 = vsub.s32 0, %v582
    %v584 = vadd.s32 %v579, 1
    %vm585 = vcmp.gt.s32.totalorder %v584, 0
    %v586 = vsel %vm585, %v584, 0
    %v587 = vshrl.u32 %v586, 5
    %v588 = vand.u32 %v586, 31
    %v589 = vsub.s32 32, %v588
    %v590 = vshrl.u32 683565275, %v589
    %v591 = vshll.u32 683565275, %v588
    %v592 = vshrl.u32 2475754826, %v589
    %v593 = vor.u32 %v591, %v592
    %v594 = vshll.u32 2475754826, %v588
    %v595 = vshrl.u32 2131351028, %v589
    %v596 = vor.u32 %v594, %v595
    %v597 = vshll.u32 2131351028, %v588
    %v598 = vshrl.u32 2102212464, %v589
    %v599 = vor.u32 %v597, %v598
    %v600 = vshll.u32 2102212464, %v588
    %v601 = vshrl.u32 920167782, %v589
    %v602 = vor.u32 %v600, %v601
    %v603 = vshll.u32 920167782, %v588
    %v604 = vshrl.u32 1326507024, %v589
    %v605 = vor.u32 %v603, %v604
    %vm606 = vcmp.lt.s32.totalorder %v587, 1
    %vm607 = vcmp.lt.s32.totalorder %v587, 2
    %vm608 = vcmp.lt.s32.totalorder %v587, 3
    %vm609 = vcmp.lt.s32.totalorder %v587, 4
    %v610 = vsel %vm606, %v590, %v593
    %v611 = vsel %vm609, %v599, 2102212464
    %v612 = vsel %vm608, %v596, %v611
    %v613 = vsel %vm607, %v610, %v612
    %v614 = vsel %vm606, %v593, %v596
    %v615 = vsel %vm609, %v602, 920167782
    %v616 = vsel %vm608, %v599, %v615
    %v617 = vsel %vm607, %v614, %v616
    %v618 = vsel %vm606, %v596, %v599
    %v619 = vsel %vm609, %v605, 1326507024
    %v620 = vsel %vm608, %v602, %v619
    %v621 = vsel %vm607, %v618, %v620
    %v622 = vshll.u32 %v582, 8
    %v623 = vmul.u32.u64.compose %v622, %v621
    %v624 = vextract.low.u32 %v623
    %v625 = vextract.high.u32 %v623
    %v626 = vmul.u32.u64.compose %v622, %v617
    %v627 = vextract.low.u32 %v626
    %v628 = vextract.high.u32 %v626
    %v629 = vmul.u32 %v622, %v613
    %v630 = vadd.s32 %v625, %v627
    %vm631 = vc.u32 %v625, %v627
    %v632 = vadd.s32 %v628, 1
    %v633 = vsel %vm631, %v632, %v628
    %v634 = vadd.s32 %v629, %v633
    %v635 = vadd.s32 %v634, 536870912
    %v636 = vshrl.u32 %v635, 30
    %v637 = vshll.u32 %v636, 30
    %v638 = vsub.s32 %v634, %v637
    %vm639 = vcmp.lt.s32.totalorder %v638, 0
    %v640 = vsub.s32 0, %v638
    %v641 = vsel %vm639, %v640, %v638
    %v642 = vclz %v641
    %v643 = vsub.s32 %v642, 2
    %vm644 = vcmp.gt.s32.totalorder 0, %v643
    %v645 = vsel %vm644, 0, %v643
    %v646 = vsub.s32 32, %v645
    %v647 = vshll.u32 %v638, %v645
    %v648 = vshrl.u32 %v630, %v646
    %v649 = vor.u32 %v647, %v648
    %v650 = vsub.s32 4294967266, %v645
    %v651 = vadd.s32 %v650, 127
    %v652 = vshll.u32 %v651, 23
    %v653 = vor.u32 4788187, %v652
    %v654 = vand.u32 2147483647, %v653
    %v656 = vcvt.s32.f32 %v649
    %v657 = vmul.f32 %v656, %v654
    %v658 = vxor.u32 %v657, 2147483648
    %v659 = vsel %vm576, %v658, %v657
    %v660 = vsub.s32 4, %v636
    %v661 = vsel %vm576, %v660, %v636
    %v662 = vsel %vm575, %v263, %v659
    %v663 = vsel %vm575, 0, %v661
    %v664 = vcosq.f32.pop %v662
    %v665 = vsinq.f32.pop %v662
    %vm666 = vweird.f32 %v263
    %v667 = vand.u32 %v663, 3
    %vm668 = vcmp.lt.s32.totalorder %v667, 2
    %vm669 = vcmp.eq.s32.totalorder %v667, 0
    %v670 = vxor.u32 %v665, 2147483648
    %v671 = vsel %vm669, %v664, %v670
    %vm672 = vcmp.eq.s32.totalorder %v667, 2
    %v673 = vxor.u32 %v664, 2147483648
    %v674 = vsel %vm672, %v673, %v665
    %v675 = vsel %vm668, %v671, %v674
    %v676 = vsel %vm666, nan, %v675
    %v677 = vand.u32 2147483647, %v264
    %vm678 = vcmp.le.f32.partialorder %v677, 0.7853982
    %vm679 = vcmp.lt.s32.totalorder %v264, 0
    %v680 = vand.u32 %v264, 2139095040
    %v681 = vshrl.u32 %v680, 23
    %v682 = vsub.s32 %v681, 127
    %v683 = vand.u32 2147483647, %v264
    %v684 = vand.u32 %v683, 8388607
    %v685 = vor.u32 %v684, 8388608
    %v686 = vsub.s32 0, %v685
    %v687 = vadd.s32 %v682, 1
    %vm688 = vcmp.gt.s32.totalorder %v687, 0
    %v689 = vsel %vm688, %v687, 0
    %v690 = vshrl.u32 %v689, 5
    %v691 = vand.u32 %v689, 31
    %v692 = vsub.s32 32, %v691
    %v693 = vshrl.u32 683565275, %v692
    %v694 = vshll.u32 683565275, %v691
    %v695 = vshrl.u32 2475754826, %v692
    %v696 = vor.u32 %v694, %v695
    %v697 = vshll.u32 2475754826, %v691
    %v698 = vshrl.u32 2131351028, %v692
    %v699 = vor.u32 %v697, %v698
    %v700 = vshll.u32 2131351028, %v691
    %v701 = vshrl.u32 2102212464, %v692
    %v702 = vor.u32 %v700, %v701
    %v703 = vshll.u32 2102212464, %v691
    %v704 = vshrl.u32 920167782, %v692
    %v705 = vor.u32 %v703, %v704
    %v706 = vshll.u32 920167782, %v691
    %v707 = vshrl.u32 1326507024, %v692
    %v708 = vor.u32 %v706, %v707
    %vm709 = vcmp.lt.s32.totalorder %v690, 1
    %vm710 = vcmp.lt.s32.totalorder %v690, 2
    %vm711 = vcmp.lt.s32.totalorder %v690, 3
    %vm712 = vcmp.lt.s32.totalorder %v690, 4
    %v713 = vsel %vm709, %v693, %v696
    %v714 = vsel %vm712, %v702, 2102212464
    %v715 = vsel %vm711, %v699, %v714
    %v716 = vsel %vm710, %v713, %v715
    %v717 = vsel %vm709, %v696, %v699
    %v718 = vsel %vm712, %v705, 920167782
    %v719 = vsel %vm711, %v702, %v718
    %v720 = vsel %vm710, %v717, %v719
    %v721 = vsel %vm709, %v699, %v702
    %v722 = vsel %vm712, %v708, 1326507024
    %v723 = vsel %vm711, %v705, %v722
    %v724 = vsel %vm710, %v721, %v723
    %v725 = vshll.u32 %v685, 8
    %v726 = vmul.u32.u64.compose %v725, %v724
    %v727 = vextract.low.u32 %v726
    %v728 = vextract.high.u32 %v726
    %v729 = vmul.u32.u64.compose %v725, %v720
    %v730 = vextract.low.u32 %v729
    %v731 = vextract.high.u32 %v729
    %v732 = vmul.u32 %v725, %v716
    %v733 = vadd.s32 %v728, %v730
    %vm734 = vc.u32 %v728, %v730
    %v735 = vadd.s32 %v731, 1
    %v736 = vsel %vm734, %v735, %v731
    %v737 = vadd.s32 %v732, %v736
    %v738 = vadd.s32 %v737, 536870912
    %v739 = vshrl.u32 %v738, 30
    %v740 = vshll.u32 %v739, 30
    %v741 = vsub.s32 %v737, %v740
    %vm742 = vcmp.lt.s32.totalorder %v741, 0
    %v743 = vsub.s32 0, %v741
    %v744 = vsel %vm742, %v743, %v741
    %v745 = vclz %v744
    %v746 = vsub.s32 %v745, 2
    %vm747 = vcmp.gt.s32.totalorder 0, %v746
    %v748 = vsel %vm747, 0, %v746
    %v749 = vsub.s32 32, %v748
    %v750 = vshll.u32 %v741, %v748
    %v751 = vshrl.u32 %v733, %v749
    %v752 = vor.u32 %v750, %v751
    %v753 = vsub.s32 4294967266, %v748
    %v754 = vadd.s32 %v753, 127
    %v755 = vshll.u32 %v754, 23
    %v756 = vor.u32 4788187, %v755
    %v757 = vand.u32 2147483647, %v756
    %v759 = vcvt.s32.f32 %v752
    %v760 = vmul.f32 %v759, %v757
    %v761 = vxor.u32 %v760, 2147483648
    %v762 = vsel %vm679, %v761, %v760
    %v763 = vsub.s32 4, %v739
    %v764 = vsel %vm679, %v763, %v739
    %v765 = vsel %vm678, %v264, %v762
    %v766 = vsel %vm678, 0, %v764
    %v767 = vcosq.f32.pop %v765
    %v768 = vsinq.f32.pop %v765
    %vm769 = vweird.f32 %v264
    %v770 = vand.u32 %v766, 3
    %vm771 = vcmp.lt.s32.totalorder %v770, 2
    %vm772 = vcmp.eq.s32.totalorder %v770, 0
    %v773 = vxor.u32 %v768, 2147483648
    %v774 = vsel %vm772, %v767, %v773
    %vm775 = vcmp.eq.s32.totalorder %v770, 2
    %v776 = vxor.u32 %v767, 2147483648
    %v777 = vsel %vm775, %v776, %v768
    %v778 = vsel %vm771, %v774, %v777
    %v779 = vsel %vm769, nan, %v778
    %v780 = vmul.f32 %v367, %v187
    %v781 = vmul.f32 %v470, %v189
    %v782 = vmul.f32 %v573, %v191
    %v783 = vmul.f32 %v676, %v193
    %v784 = vmul.f32 %v779, %v195
    %785 = vst [vmem:[#allocation2] sm:$0xff] %v780
    %786 = vst [vmem:[#allocation2 + $0x8] sm:$0xff] %v781
    %787 = vst [vmem:[#allocation2 + $0x10] sm:$0xff] %v782
    %788 = vst [vmem:[#allocation2 + $0x18] sm:$0xff] %v783
    %789 = vst [vmem:[#allocation2 + $0x20] sm:$0xff] %v784
    %v790 = vand.u32 2147483647, %v260
    %vm791 = vcmp.le.f32.partialorder %v790, 0.7853982
    %vm792 = vcmp.lt.s32.totalorder %v260, 0
    %v793 = vand.u32 %v260, 2139095040
    %v794 = vshrl.u32 %v793, 23
    %v795 = vsub.s32 %v794, 127
    %v796 = vand.u32 2147483647, %v260
    %v797 = vand.u32 %v796, 8388607
    %v798 = vor.u32 %v797, 8388608
    %v799 = vsub.s32 0, %v798
    %v800 = vadd.s32 %v795, 1
    %vm801 = vcmp.gt.s32.totalorder %v800, 0
    %v802 = vsel %vm801, %v800, 0
    %v803 = vshrl.u32 %v802, 5
    %v804 = vand.u32 %v802, 31
    %v805 = vsub.s32 32, %v804
    %v806 = vshrl.u32 683565275, %v805
    %v807 = vshll.u32 683565275, %v804
    %v808 = vshrl.u32 2475754826, %v805
    %v809 = vor.u32 %v807, %v808
    %v810 = vshll.u32 2475754826, %v804
    %v811 = vshrl.u32 2131351028, %v805
    %v812 = vor.u32 %v810, %v811
    %v813 = vshll.u32 2131351028, %v804
    %v814 = vshrl.u32 2102212464, %v805
    %v815 = vor.u32 %v813, %v814
    %v816 = vshll.u32 2102212464, %v804
    %v817 = vshrl.u32 920167782, %v805
    %v818 = vor.u32 %v816, %v817
    %v819 = vshll.u32 920167782, %v804
    %v820 = vshrl.u32 1326507024, %v805
    %v821 = vor.u32 %v819, %v820
    %vm822 = vcmp.lt.s32.totalorder %v803, 1
    %vm823 = vcmp.lt.s32.totalorder %v803, 2
    %vm824 = vcmp.lt.s32.totalorder %v803, 3
    %vm825 = vcmp.lt.s32.totalorder %v803, 4
    %v826 = vsel %vm822, %v806, %v809
    %v827 = vsel %vm825, %v815, 2102212464
    %v828 = vsel %vm824, %v812, %v827
    %v829 = vsel %vm823, %v826, %v828
    %v830 = vsel %vm822, %v809, %v812
    %v831 = vsel %vm825, %v818, 920167782
    %v832 = vsel %vm824, %v815, %v831
    %v833 = vsel %vm823, %v830, %v832
    %v834 = vsel %vm822, %v812, %v815
    %v835 = vsel %vm825, %v821, 1326507024
    %v836 = vsel %vm824, %v818, %v835
    %v837 = vsel %vm823, %v834, %v836
    %v838 = vshll.u32 %v798, 8
    %v839 = vmul.u32.u64.compose %v838, %v837
    %v840 = vextract.low.u32 %v839
    %v841 = vextract.high.u32 %v839
    %v842 = vmul.u32.u64.compose %v838, %v833
    %v843 = vextract.low.u32 %v842
    %v844 = vextract.high.u32 %v842
    %v845 = vmul.u32 %v838, %v829
    %v846 = vadd.s32 %v841, %v843
    %vm847 = vc.u32 %v841, %v843
    %v848 = vadd.s32 %v844, 1
    %v849 = vsel %vm847, %v848, %v844
    %v850 = vadd.s32 %v845, %v849
    %v851 = vadd.s32 %v850, 536870912
    %v852 = vshrl.u32 %v851, 30
    %v853 = vshll.u32 %v852, 30
    %v854 = vsub.s32 %v850, %v853
    %vm855 = vcmp.lt.s32.totalorder %v854, 0
    %v856 = vsub.s32 0, %v854
    %v857 = vsel %vm855, %v856, %v854
    %v858 = vclz %v857
    %v859 = vsub.s32 %v858, 2
    %vm860 = vcmp.gt.s32.totalorder 0, %v859
    %v861 = vsel %vm860, 0, %v859
    %v862 = vsub.s32 32, %v861
    %v863 = vshll.u32 %v854, %v861
    %v864 = vshrl.u32 %v846, %v862
    %v865 = vor.u32 %v863, %v864
    %v866 = vsub.s32 4294967266, %v861
    %v867 = vadd.s32 %v866, 127
    %v868 = vshll.u32 %v867, 23
    %v869 = vor.u32 4788187, %v868
    %v870 = vand.u32 2147483647, %v869
    %v872 = vcvt.s32.f32 %v865
    %v873 = vmul.f32 %v872, %v870
    %v874 = vxor.u32 %v873, 2147483648
    %v875 = vsel %vm792, %v874, %v873
    %v876 = vsub.s32 4, %v852
    %v877 = vsel %vm792, %v876, %v852
    %v878 = vsel %vm791, %v260, %v875
    %v879 = vsel %vm791, 0, %v877
    %v880 = vcosq.f32.pop %v878
    %v881 = vsinq.f32.pop %v878
    %vm882 = vweird.f32 %v260
    %v883 = vadd.s32 %v879, 3
    %v884 = vand.u32 %v883, 3
    %vm885 = vcmp.lt.s32.totalorder %v884, 2
    %vm886 = vcmp.eq.s32.totalorder %v884, 0
    %v887 = vxor.u32 %v881, 2147483648
    %v888 = vsel %vm886, %v880, %v887
    %vm889 = vcmp.eq.s32.totalorder %v884, 2
    %v890 = vxor.u32 %v880, 2147483648
    %v891 = vsel %vm889, %v890, %v881
    %v892 = vsel %vm885, %v888, %v891
    %v893 = vsel %vm882, nan, %v892
    %v894 = vand.u32 2147483647, %v261
    %vm895 = vcmp.le.f32.partialorder %v894, 0.7853982
    %vm896 = vcmp.lt.s32.totalorder %v261, 0
    %v897 = vand.u32 %v261, 2139095040
    %v898 = vshrl.u32 %v897, 23
    %v899 = vsub.s32 %v898, 127
    %v900 = vand.u32 2147483647, %v261
    %v901 = vand.u32 %v900, 8388607
    %v902 = vor.u32 %v901, 8388608
    %v903 = vsub.s32 0, %v902
    %v904 = vadd.s32 %v899, 1
    %vm905 = vcmp.gt.s32.totalorder %v904, 0
    %v906 = vsel %vm905, %v904, 0
    %v907 = vshrl.u32 %v906, 5
    %v908 = vand.u32 %v906, 31
    %v909 = vsub.s32 32, %v908
    %v910 = vshrl.u32 683565275, %v909
    %v911 = vshll.u32 683565275, %v908
    %v912 = vshrl.u32 2475754826, %v909
    %v913 = vor.u32 %v911, %v912
    %v914 = vshll.u32 2475754826, %v908
    %v915 = vshrl.u32 2131351028, %v909
    %v916 = vor.u32 %v914, %v915
    %v917 = vshll.u32 2131351028, %v908
    %v918 = vshrl.u32 2102212464, %v909
    %v919 = vor.u32 %v917, %v918
    %v920 = vshll.u32 2102212464, %v908
    %v921 = vshrl.u32 920167782, %v909
    %v922 = vor.u32 %v920, %v921
    %v923 = vshll.u32 920167782, %v908
    %v924 = vshrl.u32 1326507024, %v909
    %v925 = vor.u32 %v923, %v924
    %vm926 = vcmp.lt.s32.totalorder %v907, 1
    %vm927 = vcmp.lt.s32.totalorder %v907, 2
    %vm928 = vcmp.lt.s32.totalorder %v907, 3
    %vm929 = vcmp.lt.s32.totalorder %v907, 4
    %v930 = vsel %vm926, %v910, %v913
    %v931 = vsel %vm929, %v919, 2102212464
    %v932 = vsel %vm928, %v916, %v931
    %v933 = vsel %vm927, %v930, %v932
    %v934 = vsel %vm926, %v913, %v916
    %v935 = vsel %vm929, %v922, 920167782
    %v936 = vsel %vm928, %v919, %v935
    %v937 = vsel %vm927, %v934, %v936
    %v938 = vsel %vm926, %v916, %v919
    %v939 = vsel %vm929, %v925, 1326507024
    %v940 = vsel %vm928, %v922, %v939
    %v941 = vsel %vm927, %v938, %v940
    %v942 = vshll.u32 %v902, 8
    %v943 = vmul.u32.u64.compose %v942, %v941
    %v944 = vextract.low.u32 %v943
    %v945 = vextract.high.u32 %v943
    %v946 = vmul.u32.u64.compose %v942, %v937
    %v947 = vextract.low.u32 %v946
    %v948 = vextract.high.u32 %v946
    %v949 = vmul.u32 %v942, %v933
    %v950 = vadd.s32 %v945, %v947
    %vm951 = vc.u32 %v945, %v947
    %v952 = vadd.s32 %v948, 1
    %v953 = vsel %vm951, %v952, %v948
    %v954 = vadd.s32 %v949, %v953
    %v955 = vadd.s32 %v954, 536870912
    %v956 = vshrl.u32 %v955, 30
    %v957 = vshll.u32 %v956, 30
    %v958 = vsub.s32 %v954, %v957
    %vm959 = vcmp.lt.s32.totalorder %v958, 0
    %v960 = vsub.s32 0, %v958
    %v961 = vsel %vm959, %v960, %v958
    %v962 = vclz %v961
    %v963 = vsub.s32 %v962, 2
    %vm964 = vcmp.gt.s32.totalorder 0, %v963
    %v965 = vsel %vm964, 0, %v963
    %v966 = vsub.s32 32, %v965
    %v967 = vshll.u32 %v958, %v965
    %v968 = vshrl.u32 %v950, %v966
    %v969 = vor.u32 %v967, %v968
    %v970 = vsub.s32 4294967266, %v965
    %v971 = vadd.s32 %v970, 127
    %v972 = vshll.u32 %v971, 23
    %v973 = vor.u32 4788187, %v972
    %v974 = vand.u32 2147483647, %v973
    %v976 = vcvt.s32.f32 %v969
    %v977 = vmul.f32 %v976, %v974
    %v978 = vxor.u32 %v977, 2147483648
    %v979 = vsel %vm896, %v978, %v977
    %v980 = vsub.s32 4, %v956
    %v981 = vsel %vm896, %v980, %v956
    %v982 = vsel %vm895, %v261, %v979
    %v983 = vsel %vm895, 0, %v981
    %v984 = vcosq.f32.pop %v982
    %v985 = vsinq.f32.pop %v982
    %vm986 = vweird.f32 %v261
    %v987 = vadd.s32 %v983, 3
    %v988 = vand.u32 %v987, 3
    %vm989 = vcmp.lt.s32.totalorder %v988, 2
    %vm990 = vcmp.eq.s32.totalorder %v988, 0
    %v991 = vxor.u32 %v985, 2147483648
    %v992 = vsel %vm990, %v984, %v991
    %vm993 = vcmp.eq.s32.totalorder %v988, 2
    %v994 = vxor.u32 %v984, 2147483648
    %v995 = vsel %vm993, %v994, %v985
    %v996 = vsel %vm989, %v992, %v995
    %v997 = vsel %vm986, nan, %v996
    %v998 = vand.u32 2147483647, %v262
    %vm999 = vcmp.le.f32.partialorder %v998, 0.7853982
    %vm1000 = vcmp.lt.s32.totalorder %v262, 0
    %v1001 = vand.u32 %v262, 2139095040
    %v1002 = vshrl.u32 %v1001, 23
    %v1003 = vsub.s32 %v1002, 127
    %v1004 = vand.u32 2147483647, %v262
    %v1005 = vand.u32 %v1004, 8388607
    %v1006 = vor.u32 %v1005, 8388608
    %v1007 = vsub.s32 0, %v1006
    %v1008 = vadd.s32 %v1003, 1
    %vm1009 = vcmp.gt.s32.totalorder %v1008, 0
    %v1010 = vsel %vm1009, %v1008, 0
    %v1011 = vshrl.u32 %v1010, 5
    %v1012 = vand.u32 %v1010, 31
    %v1013 = vsub.s32 32, %v1012
    %v1014 = vshrl.u32 683565275, %v1013
    %v1015 = vshll.u32 683565275, %v1012
    %v1016 = vshrl.u32 2475754826, %v1013
    %v1017 = vor.u32 %v1015, %v1016
    %v1018 = vshll.u32 2475754826, %v1012
    %v1019 = vshrl.u32 2131351028, %v1013
    %v1020 = vor.u32 %v1018, %v1019
    %v1021 = vshll.u32 2131351028, %v1012
    %v1022 = vshrl.u32 2102212464, %v1013
    %v1023 = vor.u32 %v1021, %v1022
    %v1024 = vshll.u32 2102212464, %v1012
    %v1025 = vshrl.u32 920167782, %v1013
    %v1026 = vor.u32 %v1024, %v1025
    %v1027 = vshll.u32 920167782, %v1012
    %v1028 = vshrl.u32 1326507024, %v1013
    %v1029 = vor.u32 %v1027, %v1028
    %vm1030 = vcmp.lt.s32.totalorder %v1011, 1
    %vm1031 = vcmp.lt.s32.totalorder %v1011, 2
    %vm1032 = vcmp.lt.s32.totalorder %v1011, 3
    %vm1033 = vcmp.lt.s32.totalorder %v1011, 4
    %v1034 = vsel %vm1030, %v1014, %v1017
    %v1035 = vsel %vm1033, %v1023, 2102212464
    %v1036 = vsel %vm1032, %v1020, %v1035
    %v1037 = vsel %vm1031, %v1034, %v1036
    %v1038 = vsel %vm1030, %v1017, %v1020
    %v1039 = vsel %vm1033, %v1026, 920167782
    %v1040 = vsel %vm1032, %v1023, %v1039
    %v1041 = vsel %vm1031, %v1038, %v1040
    %v1042 = vsel %vm1030, %v1020, %v1023
    %v1043 = vsel %vm1033, %v1029, 1326507024
    %v1044 = vsel %vm1032, %v1026, %v1043
    %v1045 = vsel %vm1031, %v1042, %v1044
    %v1046 = vshll.u32 %v1006, 8
    %v1047 = vmul.u32.u64.compose %v1046, %v1045
    %v1048 = vextract.low.u32 %v1047
    %v1049 = vextract.high.u32 %v1047
    %v1050 = vmul.u32.u64.compose %v1046, %v1041
    %v1051 = vextract.low.u32 %v1050
    %v1052 = vextract.high.u32 %v1050
    %v1053 = vmul.u32 %v1046, %v1037
    %v1054 = vadd.s32 %v1049, %v1051
    %vm1055 = vc.u32 %v1049, %v1051
    %v1056 = vadd.s32 %v1052, 1
    %v1057 = vsel %vm1055, %v1056, %v1052
    %v1058 = vadd.s32 %v1053, %v1057
    %v1059 = vadd.s32 %v1058, 536870912
    %v1060 = vshrl.u32 %v1059, 30
    %v1061 = vshll.u32 %v1060, 30
    %v1062 = vsub.s32 %v1058, %v1061
    %vm1063 = vcmp.lt.s32.totalorder %v1062, 0
    %v1064 = vsub.s32 0, %v1062
    %v1065 = vsel %vm1063, %v1064, %v1062
    %v1066 = vclz %v1065
    %v1067 = vsub.s32 %v1066, 2
    %vm1068 = vcmp.gt.s32.totalorder 0, %v1067
    %v1069 = vsel %vm1068, 0, %v1067
    %v1070 = vsub.s32 32, %v1069
    %v1071 = vshll.u32 %v1062, %v1069
    %v1072 = vshrl.u32 %v1054, %v1070
    %v1073 = vor.u32 %v1071, %v1072
    %v1074 = vsub.s32 4294967266, %v1069
    %v1075 = vadd.s32 %v1074, 127
    %v1076 = vshll.u32 %v1075, 23
    %v1077 = vor.u32 4788187, %v1076
    %v1078 = vand.u32 2147483647, %v1077
    %v1080 = vcvt.s32.f32 %v1073
    %v1081 = vmul.f32 %v1080, %v1078
    %v1082 = vxor.u32 %v1081, 2147483648
    %v1083 = vsel %vm1000, %v1082, %v1081
    %v1084 = vsub.s32 4, %v1060
    %v1085 = vsel %vm1000, %v1084, %v1060
    %v1086 = vsel %vm999, %v262, %v1083
    %v1087 = vsel %vm999, 0, %v1085
    %v1088 = vcosq.f32.pop %v1086
    %v1089 = vsinq.f32.pop %v1086
    %vm1090 = vweird.f32 %v262
    %v1091 = vadd.s32 %v1087, 3
    %v1092 = vand.u32 %v1091, 3
    %vm1093 = vcmp.lt.s32.totalorder %v1092, 2
    %vm1094 = vcmp.eq.s32.totalorder %v1092, 0
    %v1095 = vxor.u32 %v1089, 2147483648
    %v1096 = vsel %vm1094, %v1088, %v1095
    %vm1097 = vcmp.eq.s32.totalorder %v1092, 2
    %v1098 = vxor.u32 %v1088, 2147483648
    %v1099 = vsel %vm1097, %v1098, %v1089
    %v1100 = vsel %vm1093, %v1096, %v1099
    %v1101 = vsel %vm1090, nan, %v1100
    %v1102 = vand.u32 2147483647, %v263
    %vm1103 = vcmp.le.f32.partialorder %v1102, 0.7853982
    %vm1104 = vcmp.lt.s32.totalorder %v263, 0
    %v1105 = vand.u32 %v263, 2139095040
    %v1106 = vshrl.u32 %v1105, 23
    %v1107 = vsub.s32 %v1106, 127
    %v1108 = vand.u32 2147483647, %v263
    %v1109 = vand.u32 %v1108, 8388607
    %v1110 = vor.u32 %v1109, 8388608
    %v1111 = vsub.s32 0, %v1110
    %v1112 = vadd.s32 %v1107, 1
    %vm1113 = vcmp.gt.s32.totalorder %v1112, 0
    %v1114 = vsel %vm1113, %v1112, 0
    %v1115 = vshrl.u32 %v1114, 5
    %v1116 = vand.u32 %v1114, 31
    %v1117 = vsub.s32 32, %v1116
    %v1118 = vshrl.u32 683565275, %v1117
    %v1119 = vshll.u32 683565275, %v1116
    %v1120 = vshrl.u32 2475754826, %v1117
    %v1121 = vor.u32 %v1119, %v1120
    %v1122 = vshll.u32 2475754826, %v1116
    %v1123 = vshrl.u32 2131351028, %v1117
    %v1124 = vor.u32 %v1122, %v1123
    %v1125 = vshll.u32 2131351028, %v1116
    %v1126 = vshrl.u32 2102212464, %v1117
    %v1127 = vor.u32 %v1125, %v1126
    %v1128 = vshll.u32 2102212464, %v1116
    %v1129 = vshrl.u32 920167782, %v1117
    %v1130 = vor.u32 %v1128, %v1129
    %v1131 = vshll.u32 920167782, %v1116
    %v1132 = vshrl.u32 1326507024, %v1117
    %v1133 = vor.u32 %v1131, %v1132
    %vm1134 = vcmp.lt.s32.totalorder %v1115, 1
    %vm1135 = vcmp.lt.s32.totalorder %v1115, 2
    %vm1136 = vcmp.lt.s32.totalorder %v1115, 3
    %vm1137 = vcmp.lt.s32.totalorder %v1115, 4
    %v1138 = vsel %vm1134, %v1118, %v1121
    %v1139 = vsel %vm1137, %v1127, 2102212464
    %v1140 = vsel %vm1136, %v1124, %v1139
    %v1141 = vsel %vm1135, %v1138, %v1140
    %v1142 = vsel %vm1134, %v1121, %v1124
    %v1143 = vsel %vm1137, %v1130, 920167782
    %v1144 = vsel %vm1136, %v1127, %v1143
    %v1145 = vsel %vm1135, %v1142, %v1144
    %v1146 = vsel %vm1134, %v1124, %v1127
    %v1147 = vsel %vm1137, %v1133, 1326507024
    %v1148 = vsel %vm1136, %v1130, %v1147
    %v1149 = vsel %vm1135, %v1146, %v1148
    %v1150 = vshll.u32 %v1110, 8
    %v1151 = vmul.u32.u64.compose %v1150, %v1149
    %v1152 = vextract.low.u32 %v1151
    %v1153 = vextract.high.u32 %v1151
    %v1154 = vmul.u32.u64.compose %v1150, %v1145
    %v1155 = vextract.low.u32 %v1154
    %v1156 = vextract.high.u32 %v1154
    %v1157 = vmul.u32 %v1150, %v1141
    %v1158 = vadd.s32 %v1153, %v1155
    %vm1159 = vc.u32 %v1153, %v1155
    %v1160 = vadd.s32 %v1156, 1
    %v1161 = vsel %vm1159, %v1160, %v1156
    %v1162 = vadd.s32 %v1157, %v1161
    %v1163 = vadd.s32 %v1162, 536870912
    %v1164 = vshrl.u32 %v1163, 30
    %v1165 = vshll.u32 %v1164, 30
    %v1166 = vsub.s32 %v1162, %v1165
    %vm1167 = vcmp.lt.s32.totalorder %v1166, 0
    %v1168 = vsub.s32 0, %v1166
    %v1169 = vsel %vm1167, %v1168, %v1166
    %v1170 = vclz %v1169
    %v1171 = vsub.s32 %v1170, 2
    %vm1172 = vcmp.gt.s32.totalorder 0, %v1171
    %v1173 = vsel %vm1172, 0, %v1171
    %v1174 = vsub.s32 32, %v1173
    %v1175 = vshll.u32 %v1166, %v1173
    %v1176 = vshrl.u32 %v1158, %v1174
    %v1177 = vor.u32 %v1175, %v1176
    %v1178 = vsub.s32 4294967266, %v1173
    %v1179 = vadd.s32 %v1178, 127
    %v1180 = vshll.u32 %v1179, 23
    %v1181 = vor.u32 4788187, %v1180
    %v1182 = vand.u32 2147483647, %v1181
    %v1184 = vcvt.s32.f32 %v1177
    %v1185 = vmul.f32 %v1184, %v1182
    %v1186 = vxor.u32 %v1185, 2147483648
    %v1187 = vsel %vm1104, %v1186, %v1185
    %v1188 = vsub.s32 4, %v1164
    %v1189 = vsel %vm1104, %v1188, %v1164
    %v1190 = vsel %vm1103, %v263, %v1187
    %v1191 = vsel %vm1103, 0, %v1189
    %v1192 = vcosq.f32.pop %v1190
    %v1193 = vsinq.f32.pop %v1190
    %vm1194 = vweird.f32 %v263
    %v1195 = vadd.s32 %v1191, 3
    %v1196 = vand.u32 %v1195, 3
    %vm1197 = vcmp.lt.s32.totalorder %v1196, 2
    %vm1198 = vcmp.eq.s32.totalorder %v1196, 0
    %v1199 = vxor.u32 %v1193, 2147483648
    %v1200 = vsel %vm1198, %v1192, %v1199
    %vm1201 = vcmp.eq.s32.totalorder %v1196, 2
    %v1202 = vxor.u32 %v1192, 2147483648
    %v1203 = vsel %vm1201, %v1202, %v1193
    %v1204 = vsel %vm1197, %v1200, %v1203
    %v1205 = vsel %vm1194, nan, %v1204
    %v1206 = vand.u32 2147483647, %v264
    %vm1207 = vcmp.le.f32.partialorder %v1206, 0.7853982
    %vm1208 = vcmp.lt.s32.totalorder %v264, 0
    %v1209 = vand.u32 %v264, 2139095040
    %v1210 = vshrl.u32 %v1209, 23
    %v1211 = vsub.s32 %v1210, 127
    %v1212 = vand.u32 2147483647, %v264
    %v1213 = vand.u32 %v1212, 8388607
    %v1214 = vor.u32 %v1213, 8388608
    %v1215 = vsub.s32 0, %v1214
    %v1216 = vadd.s32 %v1211, 1
    %vm1217 = vcmp.gt.s32.totalorder %v1216, 0
    %v1218 = vsel %vm1217, %v1216, 0
    %v1219 = vshrl.u32 %v1218, 5
    %v1220 = vand.u32 %v1218, 31
    %v1221 = vsub.s32 32, %v1220
    %v1222 = vshrl.u32 683565275, %v1221
    %v1223 = vshll.u32 683565275, %v1220
    %v1224 = vshrl.u32 2475754826, %v1221
    %v1225 = vor.u32 %v1223, %v1224
    %v1226 = vshll.u32 2475754826, %v1220
    %v1227 = vshrl.u32 2131351028, %v1221
    %v1228 = vor.u32 %v1226, %v1227
    %v1229 = vshll.u32 2131351028, %v1220
    %v1230 = vshrl.u32 2102212464, %v1221
    %v1231 = vor.u32 %v1229, %v1230
    %v1232 = vshll.u32 2102212464, %v1220
    %v1233 = vshrl.u32 920167782, %v1221
    %v1234 = vor.u32 %v1232, %v1233
    %v1235 = vshll.u32 920167782, %v1220
    %v1236 = vshrl.u32 1326507024, %v1221
    %v1237 = vor.u32 %v1235, %v1236
    %vm1238 = vcmp.lt.s32.totalorder %v1219, 1
    %vm1239 = vcmp.lt.s32.totalorder %v1219, 2
    %vm1240 = vcmp.lt.s32.totalorder %v1219, 3
    %vm1241 = vcmp.lt.s32.totalorder %v1219, 4
    %v1242 = vsel %vm1238, %v1222, %v1225
    %v1243 = vsel %vm1241, %v1231, 2102212464
    %v1244 = vsel %vm1240, %v1228, %v1243
    %v1245 = vsel %vm1239, %v1242, %v1244
    %v1246 = vsel %vm1238, %v1225, %v1228
    %v1247 = vsel %vm1241, %v1234, 920167782
    %v1248 = vsel %vm1240, %v1231, %v1247
    %v1249 = vsel %vm1239, %v1246, %v1248
    %v1250 = vsel %vm1238, %v1228, %v1231
    %v1251 = vsel %vm1241, %v1237, 1326507024
    %v1252 = vsel %vm1240, %v1234, %v1251
    %v1253 = vsel %vm1239, %v1250, %v1252
    %v1254 = vshll.u32 %v1214, 8
    %v1255 = vmul.u32.u64.compose %v1254, %v1253
    %v1256 = vextract.low.u32 %v1255
    %v1257 = vextract.high.u32 %v1255
    %v1258 = vmul.u32.u64.compose %v1254, %v1249
    %v1259 = vextract.low.u32 %v1258
    %v1260 = vextract.high.u32 %v1258
    %v1261 = vmul.u32 %v1254, %v1245
    %v1262 = vadd.s32 %v1257, %v1259
    %vm1263 = vc.u32 %v1257, %v1259
    %v1264 = vadd.s32 %v1260, 1
    %v1265 = vsel %vm1263, %v1264, %v1260
    %v1266 = vadd.s32 %v1261, %v1265
    %v1267 = vadd.s32 %v1266, 536870912
    %v1268 = vshrl.u32 %v1267, 30
    %v1269 = vshll.u32 %v1268, 30
    %v1270 = vsub.s32 %v1266, %v1269
    %vm1271 = vcmp.lt.s32.totalorder %v1270, 0
    %v1272 = vsub.s32 0, %v1270
    %v1273 = vsel %vm1271, %v1272, %v1270
    %v1274 = vclz %v1273
    %v1275 = vsub.s32 %v1274, 2
    %vm1276 = vcmp.gt.s32.totalorder 0, %v1275
    %v1277 = vsel %vm1276, 0, %v1275
    %v1278 = vsub.s32 32, %v1277
    %v1279 = vshll.u32 %v1270, %v1277
    %v1280 = vshrl.u32 %v1262, %v1278
    %v1281 = vor.u32 %v1279, %v1280
    %v1282 = vsub.s32 4294967266, %v1277
    %v1283 = vadd.s32 %v1282, 127
    %v1284 = vshll.u32 %v1283, 23
    %v1285 = vor.u32 4788187, %v1284
    %v1286 = vand.u32 2147483647, %v1285
    %v1288 = vcvt.s32.f32 %v1281
    %v1289 = vmul.f32 %v1288, %v1286
    %v1290 = vxor.u32 %v1289, 2147483648
    %v1291 = vsel %vm1208, %v1290, %v1289
    %v1292 = vsub.s32 4, %v1268
    %v1293 = vsel %vm1208, %v1292, %v1268
    %v1294 = vsel %vm1207, %v264, %v1291
    %v1295 = vsel %vm1207, 0, %v1293
    %v1296 = vcosq.f32.pop %v1294
    %v1297 = vsinq.f32.pop %v1294
    %vm1298 = vweird.f32 %v264
    %v1299 = vadd.s32 %v1295, 3
    %v1300 = vand.u32 %v1299, 3
    %vm1301 = vcmp.lt.s32.totalorder %v1300, 2
    %vm1302 = vcmp.eq.s32.totalorder %v1300, 0
    %v1303 = vxor.u32 %v1297, 2147483648
    %v1304 = vsel %vm1302, %v1296, %v1303
    %vm1305 = vcmp.eq.s32.totalorder %v1300, 2
    %v1306 = vxor.u32 %v1296, 2147483648
    %v1307 = vsel %vm1305, %v1306, %v1297
    %v1308 = vsel %vm1301, %v1304, %v1307
    %v1309 = vsel %vm1298, nan, %v1308
    %v1310 = vmul.f32 %v893, %v187
    %v1311 = vmul.f32 %v997, %v189
    %v1312 = vmul.f32 %v1101, %v191
    %v1313 = vmul.f32 %v1205, %v193
    %v1314 = vmul.f32 %v1309, %v195
    %1315 = vst [vmem:[#allocation4] sm:$0xff] %v1310
    %1316 = vst [vmem:[#allocation4 + $0x8] sm:$0xff] %v1311
    %1317 = vst [vmem:[#allocation4 + $0x10] sm:$0xff] %v1312
    %1318 = vst [vmem:[#allocation4 + $0x18] sm:$0xff] %v1313
    %1319 = vst [vmem:[#allocation4 + $0x20] sm:$0xff] %v1314
    // Predicated region
    $region34: #{tpu_custom_call.1} parent=1 // pred_check
      _
    $region35: #{tpu_custom_call.1} parent=1 // pred_check_branch
      %1321 = sbr.rel (0) target = $region37
    $region36: #{tpu_custom_call.1} parent=1 // pred_region
      %s1323 = ssub.s32 640, 640
      %1324 = vsyncadd [#allocation3], %s1323
      %s1326 = sshll.u32 [#allocation2], 4
      %s1327 = int_to_ptr.vmem [resolvable:$true] %s1326
      %1329 = dma.vmem_to_hbm [thread:$0]  %s1327, 640, %s8, [#allocation3]
    $region37: #{tpu_custom_call.1} parent=1 // pred_fallthru
      _
    // Predicated region
    $region38: #{tpu_custom_call.1} parent=1 // pred_check
      _
    $region39: #{tpu_custom_call.1} parent=1 // pred_check_branch
      %1331 = sbr.rel (0) target = $region41
    $region40: #{tpu_custom_call.1} parent=1 // pred_region
      %s1333 = ssub.s32 640, 640
      %1334 = vsyncadd [#allocation5], %s1333
      %s1336 = sshll.u32 [#allocation4], 4
      %s1337 = int_to_ptr.vmem [resolvable:$true] %s1336
      %1339 = dma.vmem_to_hbm [thread:$0]  %s1337, 640, %s9, [#allocation5]
    $region41: #{tpu_custom_call.1} parent=1 // pred_fallthru
      _
    // Predicated region
    $region42: #{tpu_custom_call.1} parent=1 // pred_check
      _
    $region43: #{tpu_custom_call.1} parent=1 // pred_check_branch
      %1341 = sbr.rel (0) target = $region45
    $region44: #{tpu_custom_call.1} parent=1 // pred_region
      %1342 = dma.done [#allocation3], 640
    $region45: #{tpu_custom_call.1} parent=1 // pred_fallthru
      _
    // Predicated region
    $region46: #{tpu_custom_call.1} parent=1 // pred_check
      _
    $region47: #{tpu_custom_call.1} parent=1 // pred_check_branch
      %1344 = sbr.rel (0) target = $region49
    $region48: #{tpu_custom_call.1} parent=1 // pred_region
      %1345 = dma.done [#allocation5], 640
    $region49: #{tpu_custom_call.1} parent=1 // pred_fallthru
      _
    %1346 = vsyncpa [#allocation3], 1
    %1347 = vsyncpa [#allocation5], 1

</llo_original>
